<compile_context>
chip_gen: v6e
topology: v6e:2x2x1
jax: 0.10.0
libtpu: 0.0.40
codegen_flags: <defaults>
</compile_context>

<pallas_src>
import jax
import jax.numpy as jnp
from jax.experimental import pallas as pl
from jax.experimental.pallas import tpu as pltpu

# ---- "config" from the reference module -------------------------------------
N_TANKS = 4
INPUT_DIMS = N_TANKS + 1          # 5
FC1_DIMS = 8
FC2_DIMS = 8
N_ACTIONS = N_TANKS               # 4
HEAD_DIMS = N_ACTIONS + 1         # 5 (fused pi logits + v)

# ---- TPU tile sizes ----------------------------------------------------------
LANE = 128                        # padded hidden width (MXU/vreg lane dim)
SUBLANE = 8
HEAD_PAD = 8                      # fused head output padded 5 -> 8 lanes
MAX_TB = 4096                     # batch tile cap (well under VMEM on v5e/v6e/v7x)
DOT_DTYPE = jnp.bfloat16          # MXU operand dtype (f32 accumulation)


def _round_up(x, m):
    return ((x + m - 1) // m) * m


def _pad2d(a, rows, cols):
    r, c = a.shape
    return jnp.pad(a, ((0, rows - r), (0, cols - c)))


# ---- one-time parameter prep (hoisted out of the per-step forward) -----------
def prepare_params(params, dot_dtype=DOT_DTYPE):
    """Pad / fuse / cast the Linear weights once; reuse across RL steps."""
    w1, b1, w2, b2, wpi, bpi, wv, bv = params
    w1_p = _pad2d(w1, INPUT_DIMS, LANE).astype(dot_dtype)            # (5, 128)
    w2_p = _pad2d(w2, LANE, LANE).astype(dot_dtype)                  # (128, 128)
    wh = jnp.concatenate([wpi, wv], axis=1)                          # (8, 5)
    wh_p = _pad2d(wh, LANE, HEAD_PAD).astype(dot_dtype)              # (128, 8)
    b1_p = _pad2d(b1.reshape(1, -1).astype(jnp.float32), 1, LANE)    # (1, 128)
    b2_p = _pad2d(b2.reshape(1, -1).astype(jnp.float32), 1, LANE)    # (1, 128)
    bh_p = _pad2d(jnp.concatenate([bpi, bv]).reshape(1, -1).astype(jnp.float32),
                  1, HEAD_PAD)                                       # (1, 8)
    return w1_p, w2_p, wh_p, b1_p, b2_p, bh_p


# ---- Pallas kernel: whole forward pass for one batch tile ---------------------
def actor_critic_kernel(x_ref, w1_ref, w2_ref, wh_ref, b1_ref, b2_ref, bh_ref,
                        out_ref):
    x = x_ref[...].astype(DOT_DTYPE)                                 # (TB, 5)

    h1 = jnp.dot(x, w1_ref[...],
                 preferred_element_type=jnp.float32) + b1_ref[...]   # (TB, 128)
    h1 = jnp.maximum(h1, 0.0)                                        # ReLU (f32)

    h2 = jnp.dot(h1.astype(DOT_DTYPE), w2_ref[...],
                 preferred_element_type=jnp.float32) + b2_ref[...]
    h2 = jnp.maximum(h2, 0.0)                                        # ReLU (f32)

    # Fused head: lanes [0, N_ACTIONS) = pi logits, lane N_ACTIONS = v,
    # lanes > N_ACTIONS are zero padding.  Output is only 8 lanes wide.
    y = jnp.dot(h2.astype(DOT_DTYPE), wh_ref[...],
                preferred_element_type=jnp.float32) + bh_ref[...]    # (TB, 8)
    lane = jax.lax.broadcasted_iota(jnp.int32, y.shape, dimension=1)
    out_ref[...] = jnp.where(lane < N_ACTIONS, jax.nn.sigmoid(y), y)


# ---- wrapper ------------------------------------------------------------------
def actor_critic_forward(obs, padded_params):
    """obs: (B, INPUT_DIMS) -> (pi: (B, N_ACTIONS), v: (B, 1))."""
    w1_p, w2_p, wh_p, b1_p, b2_p, bh_p = padded_params
    B = obs.shape[0]

    # Large batch tile (amortizes ~0.35us/grid-step); cap at ceil(B/2) so big
    # batches still yield >= 2 tiles for the two v7x TensorCores.
    tb = min(MAX_TB, max(SUBLANE, _round_up(pl.cdiv(B, 2), SUBLANE)))
    n_tiles = pl.cdiv(B, tb)
    Bp = n_tiles * tb

    x = obs.astype(jnp.float32)
    if Bp != B:
        # Pad only the batch remainder (rows are independent and sliced off);
        # features stay at 5 -> no feature-pad HBM round trip.
        x = jnp.pad(x, ((0, Bp - B), (0, 0)))

    out_p = pl.pallas_call(
        actor_critic_kernel,
        out_shape=jax.ShapeDtypeStruct((Bp, HEAD_PAD), jnp.float32),
        grid=(n_tiles,),
        in_specs=[
            # batch-tiled input: last block dim (5) equals the full array dim
            pl.BlockSpec((tb, INPUT_DIMS), lambda i: (i, 0)),
            # weights / biases: constant index -> fetched once, VMEM-resident
            pl.BlockSpec((INPUT_DIMS, LANE), lambda i: (0, 0)),
            pl.BlockSpec((LANE, LANE), lambda i: (0, 0)),
            pl.BlockSpec((LANE, HEAD_PAD), lambda i: (0, 0)),
            pl.BlockSpec((1, LANE), lambda i: (0, 0)),
            pl.BlockSpec((1, LANE), lambda i: (0, 0)),
            pl.BlockSpec((1, HEAD_PAD), lambda i: (0, 0)),
        ],
        # narrow (8-lane) output block: last block dim == full array dim
        out_specs=pl.BlockSpec((tb, HEAD_PAD), lambda i: (i, 0)),
        compiler_params=pltpu.CompilerParams(
            dimension_semantics=("parallel",)),
    )(x, w1_p, w2_p, wh_p, b1_p, b2_p, bh_p)

    pi = out_p[:B, :N_ACTIONS]
    v = out_p[:B, N_ACTIONS:N_ACTIONS + 1]
    return pi, v


# ---- deterministic parameter init (mimics nn.Linear default init) -------------
def init_params(key):
    def linear(key, fan_in, fan_out):
        kw, kb = jax.random.split(key)
        bound = 1.0 / jnp.sqrt(jnp.float32(fan_in))
        # stored as (in, out) so that y = x @ W + b
        w = jax.random.uniform(kw, (fan_in, fan_out), jnp.float32, -bound, bound)
        b = jax.random.uniform(kb, (fan_out,), jnp.float32, -bound, bound)
        return w, b

    k1, k2, k3, k4 = jax.random.split(key, 4)
    w1, b1 = linear(k1, INPUT_DIMS, FC1_DIMS)
    w2, b2 = linear(k2, FC1_DIMS, FC2_DIMS)
    wpi, bpi = linear(k3, FC2_DIMS, N_ACTIONS)
    wv, bv = linear(k4, FC2_DIMS, 1)
    return (w1, b1, w2, b2, wpi, bpi, wv, bv)


def reference_forward(obs, params):
    w1, b1, w2, b2, wpi, bpi, wv, bv = params
    x = jnp.maximum(obs @ w1 + b1, 0.0)
    x = jnp.maximum(x @ w2 + b2, 0.0)
    return jax.nn.sigmoid(x @ wpi + bpi), x @ wv + bv


if __name__ == "__main__":
    key = jax.random.PRNGKey(0)
    kp, kx = jax.random.split(key)
    params = init_params(kp)
    padded_params = prepare_params(params)   # one-time; reuse across RL steps

    batch = 2
    obs = jax.random.normal(kx, (batch, INPUT_DIMS), jnp.float32)

    pi, v = actor_critic_forward(obs, padded_params)
    jax.block_until_ready((pi, v))

    pi_ref, v_ref = reference_forward(obs, params)
    assert pi.shape == (batch, N_ACTIONS) and v.shape == (batch, 1)
    # bf16 MXU operands (f32 accumulation) -> relaxed tolerance vs f32 reference
    assert jnp.allclose(pi, pi_ref, atol=2e-2), "pi mismatch"
    assert jnp.allclose(v, v_ref, atol=2e-2), "v mismatch"

    print("KERNEL_OK")
</pallas_src>

<mosaic_0001>
module attributes {stable_mosaic.version = 11 : i64} {
  func.func @actor_critic_kernel(%arg0: i32, %arg1: memref<8x5xf32, #tpu.memory_space<vmem>>, %arg2: memref<5x128xbf16, #tpu.memory_space<vmem>>, %arg3: memref<128x128xbf16, #tpu.memory_space<vmem>>, %arg4: memref<128x8xbf16, #tpu.memory_space<vmem>>, %arg5: memref<1x128xf32, #tpu.memory_space<vmem>>, %arg6: memref<1x128xf32, #tpu.memory_space<vmem>>, %arg7: memref<1x8xf32, #tpu.memory_space<vmem>>, %arg8: memref<8x8xf32, #tpu.memory_space<vmem>>) attributes {dimension_semantics = [#tpu.dimension_semantics<parallel>], iteration_bounds = array<i64: 1>, scalar_prefetch = 0 : i64, scratch_operands = 0 : i64, tpu.core_type = #tpu.core_type<tc>, window_params = [{transform_indices = @transform_0, window_bounds = array<i64: 8, 5>}, {pipeline_mode = #tpu.pipeline_mode<synchronous>, transform_indices = @transform_1, window_bounds = array<i64: 5, 128>}, {pipeline_mode = #tpu.pipeline_mode<synchronous>, transform_indices = @transform_2, window_bounds = array<i64: 128, 128>}, {pipeline_mode = #tpu.pipeline_mode<synchronous>, transform_indices = @transform_3, window_bounds = array<i64: 128, 8>}, {pipeline_mode = #tpu.pipeline_mode<synchronous>, transform_indices = @transform_4, window_bounds = array<i64: 1, 128>}, {pipeline_mode = #tpu.pipeline_mode<synchronous>, transform_indices = @transform_5, window_bounds = array<i64: 1, 128>}, {pipeline_mode = #tpu.pipeline_mode<synchronous>, transform_indices = @transform_6, window_bounds = array<i64: 1, 8>}, {transform_indices = @transform_7, window_bounds = array<i64: 8, 8>}]} {
    %c0 = arith.constant 0 : index
    %c0_0 = arith.constant 0 : index
    %0 = vector.load %arg1[%c0, %c0_0] : memref<8x5xf32, #tpu.memory_space<vmem>>, vector<8x5xf32>
    %1 = arith.truncf %0 : vector<8x5xf32> to vector<8x5xbf16>
    %c0_1 = arith.constant 0 : index
    %c0_2 = arith.constant 0 : index
    %2 = vector.load %arg2[%c0_1, %c0_2] : memref<5x128xbf16, #tpu.memory_space<vmem>>, vector<5x128xbf16>
    %cst = arith.constant dense<0.000000e+00> : vector<8x128xf32>
    %3 = tpu.matmul %1, %2, %cst {dimension_numbers = #tpu.dot_dimension_numbers<[1], [0], [0], [1], [0, 0, 1, 1], [], []>} : vector<8x5xbf16>, vector<5x128xbf16>, vector<8x128xf32> -> vector<8x128xf32>
    %c0_3 = arith.constant 0 : index
    %c0_4 = arith.constant 0 : index
    %4 = vector.load %arg5[%c0_3, %c0_4] : memref<1x128xf32, #tpu.memory_space<vmem>>, vector<1x128xf32>
    %5 = vector.broadcast %4 : vector<1x128xf32> to vector<8x128xf32>
    %6 = arith.addf %3, %5 : vector<8x128xf32>
    %cst_5 = arith.constant 0.000000e+00 : f32
    %7 = vector.broadcast %cst_5 : f32 to vector<8x128xf32>
    %8 = arith.maximumf %6, %7 : vector<8x128xf32>
    %9 = arith.truncf %8 : vector<8x128xf32> to vector<8x128xbf16>
    %c0_6 = arith.constant 0 : index
    %c0_7 = arith.constant 0 : index
    %10 = vector.load %arg3[%c0_6, %c0_7] : memref<128x128xbf16, #tpu.memory_space<vmem>>, vector<128x128xbf16>
    %cst_8 = arith.constant dense<0.000000e+00> : vector<8x128xf32>
    %11 = tpu.matmul %9, %10, %cst_8 {dimension_numbers = #tpu.dot_dimension_numbers<[1], [0], [0], [1], [0, 0, 1, 1], [], []>} : vector<8x128xbf16>, vector<128x128xbf16>, vector<8x128xf32> -> vector<8x128xf32>
    %c0_9 = arith.constant 0 : index
    %c0_10 = arith.constant 0 : index
    %12 = vector.load %arg6[%c0_9, %c0_10] : memref<1x128xf32, #tpu.memory_space<vmem>>, vector<1x128xf32>
    %13 = vector.broadcast %12 : vector<1x128xf32> to vector<8x128xf32>
    %14 = arith.addf %11, %13 : vector<8x128xf32>
    %cst_11 = arith.constant 0.000000e+00 : f32
    %15 = vector.broadcast %cst_11 : f32 to vector<8x128xf32>
    %16 = arith.maximumf %14, %15 : vector<8x128xf32>
    %17 = arith.truncf %16 : vector<8x128xf32> to vector<8x128xbf16>
    %c0_12 = arith.constant 0 : index
    %c0_13 = arith.constant 0 : index
    %18 = vector.load %arg4[%c0_12, %c0_13] : memref<128x8xbf16, #tpu.memory_space<vmem>>, vector<128x8xbf16>
    %cst_14 = arith.constant dense<0.000000e+00> : vector<8x8xf32>
    %19 = tpu.matmul %17, %18, %cst_14 {dimension_numbers = #tpu.dot_dimension_numbers<[1], [0], [0], [1], [0, 0, 1, 1], [], []>} : vector<8x128xbf16>, vector<128x8xbf16>, vector<8x8xf32> -> vector<8x8xf32>
    %c0_15 = arith.constant 0 : index
    %c0_16 = arith.constant 0 : index
    %20 = vector.load %arg7[%c0_15, %c0_16] : memref<1x8xf32, #tpu.memory_space<vmem>>, vector<1x8xf32>
    %21 = vector.broadcast %20 : vector<1x8xf32> to vector<8x8xf32>
    %22 = arith.addf %19, %21 : vector<8x8xf32>
    %23 = tpu.iota {dimensions = array<i32: 1>} : vector<8x8xi32>
    %c4_i32 = arith.constant 4 : i32
    %24 = vector.broadcast %c4_i32 : i32 to vector<8x8xi32>
    %25 = arith.cmpi slt, %23, %24 : vector<8x8xi32>
    %26 = arith.negf %22 : vector<8x8xf32>
    %27 = math.exp %26 : vector<8x8xf32>
    %cst_17 = arith.constant 1.000000e+00 : f32
    %28 = vector.broadcast %cst_17 : f32 to vector<8x8xf32>
    %29 = arith.addf %28, %27 : vector<8x8xf32>
    %30 = arith.divf %28, %29 : vector<8x8xf32>
    %31 = arith.select %25, %30, %22 : vector<8x8xi1>, vector<8x8xf32>
    %c0_18 = arith.constant 0 : index
    %c0_19 = arith.constant 0 : index
    %32 = vector.load %arg8[%c0_18, %c0_19] : memref<8x8xf32, #tpu.memory_space<vmem>>, vector<8x8xf32>
    tpu.vector_store %arg8[%c0_18, %c0_19], %31 {strides = array<i32>} : memref<8x8xf32, #tpu.memory_space<vmem>>, vector<8x8xf32>,
    return
  }
  func.func @transform_0(%arg0: i32) -> (i32, i32) {
    %c0_i32 = arith.constant 0 : i32
    %c0_i32_0 = arith.constant 0 : i32
    return %arg0, %c0_i32 : i32, i32
  }
  func.func @transform_1(%arg0: i32) -> (i32, i32) {
    %c0_i32 = arith.constant 0 : i32
    %c0_i32_0 = arith.constant 0 : i32
    %c0_i32_1 = arith.constant 0 : i32
    return %c0_i32, %c0_i32_0 : i32, i32
  }
  func.func @transform_2(%arg0: i32) -> (i32, i32) {
    %c0_i32 = arith.constant 0 : i32
    %c0_i32_0 = arith.constant 0 : i32
    %c0_i32_1 = arith.constant 0 : i32
    return %c0_i32, %c0_i32_0 : i32, i32
  }
  func.func @transform_3(%arg0: i32) -> (i32, i32) {
    %c0_i32 = arith.constant 0 : i32
    %c0_i32_0 = arith.constant 0 : i32
    %c0_i32_1 = arith.constant 0 : i32
    return %c0_i32, %c0_i32_0 : i32, i32
  }
  func.func @transform_4(%arg0: i32) -> (i32, i32) {
    %c0_i32 = arith.constant 0 : i32
    %c0_i32_0 = arith.constant 0 : i32
    %c0_i32_1 = arith.constant 0 : i32
    return %c0_i32, %c0_i32_0 : i32, i32
  }
  func.func @transform_5(%arg0: i32) -> (i32, i32) {
    %c0_i32 = arith.constant 0 : i32
    %c0_i32_0 = arith.constant 0 : i32
    %c0_i32_1 = arith.constant 0 : i32
    return %c0_i32, %c0_i32_0 : i32, i32
  }
  func.func @transform_6(%arg0: i32) -> (i32, i32) {
    %c0_i32 = arith.constant 0 : i32
    %c0_i32_0 = arith.constant 0 : i32
    %c0_i32_1 = arith.constant 0 : i32
    return %c0_i32, %c0_i32_0 : i32, i32
  }
  func.func @transform_7(%arg0: i32) -> (i32, i32) {
    %c0_i32 = arith.constant 0 : i32
    %c0_i32_0 = arith.constant 0 : i32
    return %arg0, %c0_i32 : i32, i32
  }
}

</mosaic_0001>

<llo_original>
// kernel: tpu_custom_call.1
$region0: #{tpu_custom_call.1}
  #allocation0 [shape = 'u32[]', space=smem, size = 0x4, offset = 0x4, fixed_abs, tag = 'smem constant byte address 0x4 - core index']
  #allocation1 [shape = 'u32[144,128]{1,0:T(1,128)}', space=vmem, size = 0x12000, scoped, tag = 'internal scratch']
  %s0 = inlined_call_operand.hbm [shape: f32[8,5], index: 0, kind: input, shape index: {}]
  %s1 = inlined_call_operand.vmem [shape: bf16[5,128], index: 1, kind: input, shape index: {}]
  %s2 = inlined_call_operand.vmem [shape: bf16[128,128], index: 2, kind: input, shape index: {}]
  %s3 = inlined_call_operand.vmem [shape: bf16[128,8], index: 3, kind: input, shape index: {}]
  %s4 = inlined_call_operand.vmem [shape: f32[1,128], index: 4, kind: input, shape index: {}]
  %s5 = inlined_call_operand.vmem [shape: f32[1,128], index: 5, kind: input, shape index: {}]
  %s6 = inlined_call_operand.vmem [shape: f32[1,8], index: 6, kind: input, shape index: {}]
  %s7 = inlined_call_operand.hbm [shape: f32[8,8], index: 7, kind: output, shape index: {}]
  %s8 = sld [smem:[#allocation0]]
  $region42: #{tpu_custom_call.1} parent=0
    _
  %s10 = ssub.s32 1, %s8
  %s11 = scalar_select 0, %s10, %s8
  $region1: #{tpu_custom_call.1} parent=0
    #allocation2 [shape = 'u8[4096]{0}', space=vmem, size = 0x1000, scoped, tag = 'input window, operand 0, single buffered']
    #allocation3 [shape = 's32[1]{0}', space=sflag, size = 0x4, scoped, tag = 'scoped memory for tpu_custom_call.1']
    #allocation4 [shape = 's32[1]{0}', space=sflag, size = 0x4, scoped, tag = 'scoped memory for tpu_custom_call.1']
    #allocation5 [shape = 'u8[4096]{0}', space=vmem, size = 0x1000, scoped, tag = 'output window, operand 0, single buffered']
    %12 = vsyncpa [#allocation3], 0
    %13 = vsyncpa [#allocation4], 0
    // Predicated region
    $region2: #{tpu_custom_call.1} parent=1 // pred_check
      _
    $region3: #{tpu_custom_call.1} parent=1 // pred_check_branch
      %15 = sbr.rel (0) target = $region5
    $region4: #{tpu_custom_call.1} parent=1 // pred_region
      %s17 = ssub.s32 128, 128
      %18 = vsyncadd [#allocation3], %s17
      %s20 = sshll.u32 [#allocation2], 4
      %s21 = int_to_ptr.vmem [resolvable:$true] %s20
      %23 = dma.hbm_to_vmem [thread:$0]  %s0, 128, %s21, [#allocation3]
    $region5: #{tpu_custom_call.1} parent=1 // pred_fallthru
      _
    // Predicated region
    $region6: #{tpu_custom_call.1} parent=1 // pred_check
      _
    $region7: #{tpu_custom_call.1} parent=1 // pred_check_branch
      %25 = sbr.rel (0) target = $region9
    $region8: #{tpu_custom_call.1} parent=1 // pred_region
      _
    $region9: #{tpu_custom_call.1} parent=1 // pred_fallthru
      _
    // Predicated region
    $region10: #{tpu_custom_call.1} parent=1 // pred_check
      _
    $region11: #{tpu_custom_call.1} parent=1 // pred_check_branch
      %27 = sbr.rel (0) target = $region13
    $region12: #{tpu_custom_call.1} parent=1 // pred_region
      _
    $region13: #{tpu_custom_call.1} parent=1 // pred_fallthru
      _
    // Predicated region
    $region14: #{tpu_custom_call.1} parent=1 // pred_check
      _
    $region15: #{tpu_custom_call.1} parent=1 // pred_check_branch
      %29 = sbr.rel (0) target = $region17
    $region16: #{tpu_custom_call.1} parent=1 // pred_region
      _
    $region17: #{tpu_custom_call.1} parent=1 // pred_fallthru
      _
    // Predicated region
    $region18: #{tpu_custom_call.1} parent=1 // pred_check
      _
    $region19: #{tpu_custom_call.1} parent=1 // pred_check_branch
      %31 = sbr.rel (0) target = $region21
    $region20: #{tpu_custom_call.1} parent=1 // pred_region
      _
    $region21: #{tpu_custom_call.1} parent=1 // pred_fallthru
      _
    // Predicated region
    $region22: #{tpu_custom_call.1} parent=1 // pred_check
      _
    $region23: #{tpu_custom_call.1} parent=1 // pred_check_branch
      %33 = sbr.rel (0) target = $region25
    $region24: #{tpu_custom_call.1} parent=1 // pred_region
      _
    $region25: #{tpu_custom_call.1} parent=1 // pred_fallthru
      _
    // Predicated region
    $region26: #{tpu_custom_call.1} parent=1 // pred_check
      _
    $region27: #{tpu_custom_call.1} parent=1 // pred_check_branch
      %35 = sbr.rel (0) target = $region29
    $region28: #{tpu_custom_call.1} parent=1 // pred_region
      _
    $region29: #{tpu_custom_call.1} parent=1 // pred_fallthru
      _
    // Predicated region
    $region30: #{tpu_custom_call.1} parent=1 // pred_check
      _
    $region31: #{tpu_custom_call.1} parent=1 // pred_check_branch
      %37 = sbr.rel (0) target = $region33
    $region32: #{tpu_custom_call.1} parent=1 // pred_region
      %38 = dma.done [#allocation3], 128
    $region33: #{tpu_custom_call.1} parent=1 // pred_fallthru
      _
    %v40 = vld [vmem:[#allocation2] sm:$0xff]
    %v41 = vpack.c.bf16 %v40, %v40
    %v42 = vld [vmem:[%s1] sm:$0x7]
    %v43 = vld [vmem:[%s4] sm:$0x1]
    %v45 = vlaneseq
    %v46 = vshrl.u32 %v45, 7
    %v47 = vsub.s32 0, %v46
    %v48 = vrot.slane %v43, %v47
    %vm50 = vcmask 39936
    %v52 = vsel %vm50, %v41, 0
    %vm54 = vcmask 1041408
    %vm55 = vcmask 1042432
    %v56 = vsel %vm54, 4294967295, 65535
    %v57 = vsel %vm55, %v56, 0
    %v59 = vand.u32 %v42, %v57
    %61 = vmatprep.subr.bf16.mxu0 0
    %62 = vmatpush1.bf16.msra.mxu0 0
    %63 = vmatprep.subr.bf16.mxu0 0
    %64 = vmatpush1.bf16.msra.mxu0 0
    %65 = vmatprep.subr.bf16.mxu0 0
    %66 = vmatpush1.bf16.msra.mxu0 0
    %67 = vmatprep.subr.bf16.mxu0 0
    %68 = vmatpush1.bf16.msra.mxu0 0
    %69 = vmatprep.subr.bf16.mxu0 0
    %70 = vmatpush1.bf16.msra.mxu0 0
    %71 = vmatprep.subr.bf16.mxu0 0
    %72 = vmatpush1.bf16.msra.mxu0 0
    %73 = vmatprep.subr.bf16.mxu0 0
    %74 = vmatpush1.bf16.msra.mxu0 0
    %75 = vmatprep.subr.bf16.mxu0 0
    %76 = vmatpush1.bf16.msra.mxu0 %v59
    %77 = vmatprep.subr.bf16.mxu0 0
    %78 = vmatpush2.bf16.msra.mxu0 0
    %79 = vmatprep.subr.bf16.mxu0 0
    %80 = vmatpush2.bf16.msra.mxu0 0
    %81 = vmatprep.subr.bf16.mxu0 0
    %82 = vmatpush2.bf16.msra.mxu0 0
    %83 = vmatprep.subr.bf16.mxu0 0
    %84 = vmatpush2.bf16.msra.mxu0 0
    %85 = vmatprep.subr.bf16.mxu0 0
    %86 = vmatpush2.bf16.msra.mxu0 0
    %87 = vmatprep.subr.bf16.mxu0 0
    %88 = vmatpush2.bf16.msra.mxu0 0
    %89 = vmatprep.subr.bf16.mxu0 0
    %90 = vmatpush2.bf16.msra.mxu0 0
    %91 = vmatprep.subr.bf16.mxu0 0
    %92 = vmatpush2.bf16.msra.mxu0 0
    %93 = vmatprep.mubr.bf16.mxu0 0
    %94 = vmatmul.mubr.bf16.gmra.mxu0 %v52
    %v95 = vpop.f32.mrf.mxu0
    %v96 = vadd.f32 %v48, %v95
    %v97 = vpop.f32.mrf.mxu0
    %v98 = vpop.f32.mrf.mxu0
    %v99 = vpop.f32.mrf.mxu0
    %100 = vdwg.mxu0
    %v101 = vmax.f32 %v96, 0.0
    %v102 = vpack.c.bf16 %v101, %v101
    %v103 = vld [vmem:[%s2] sm:$0xf]
    %v104 = vld [vmem:[%s2 + $0x4] sm:$0xf]
    %v105 = vld [vmem:[%s2 + $0x8] sm:$0xf]
    %v106 = vld [vmem:[%s2 + $0xc] sm:$0xf]
    %v107 = vld [vmem:[%s2 + $0x10] sm:$0xf]
    %v108 = vld [vmem:[%s2 + $0x14] sm:$0xf]
    %v109 = vld [vmem:[%s2 + $0x18] sm:$0xf]
    %v110 = vld [vmem:[%s2 + $0x1c] sm:$0xf]
    %v111 = vld [vmem:[%s2 + $0x20] sm:$0xf]
    %v112 = vld [vmem:[%s2 + $0x24] sm:$0xf]
    %v113 = vld [vmem:[%s2 + $0x28] sm:$0xf]
    %v114 = vld [vmem:[%s2 + $0x2c] sm:$0xf]
    %v115 = vld [vmem:[%s2 + $0x30] sm:$0xf]
    %v116 = vld [vmem:[%s2 + $0x34] sm:$0xf]
    %v117 = vld [vmem:[%s2 + $0x38] sm:$0xf]
    %v118 = vld [vmem:[%s2 + $0x3c] sm:$0xf]
    %v119 = vld [vmem:[%s5] sm:$0x1]
    %v121 = vlaneseq
    %v122 = vshrl.u32 %v121, 7
    %v123 = vsub.s32 0, %v122
    %v124 = vrot.slane %v119, %v123
    %v142 = vunpack.c.l.b16 %v103
    %v143 = vunpack.c.l.b16 %v104
    %v144 = vunpack.c.l.b16 %v105
    %v145 = vunpack.c.l.b16 %v106
    %v146 = vunpack.c.l.b16 %v107
    %v147 = vunpack.c.l.b16 %v108
    %v148 = vunpack.c.l.b16 %v109
    %v149 = vunpack.c.l.b16 %v110
    %v150 = vunpack.c.l.b16 %v111
    %v151 = vunpack.c.l.b16 %v112
    %v152 = vunpack.c.l.b16 %v113
    %v153 = vunpack.c.l.b16 %v114
    %v154 = vunpack.c.l.b16 %v115
    %v155 = vunpack.c.l.b16 %v116
    %v156 = vunpack.c.l.b16 %v117
    %v157 = vunpack.c.l.b16 %v118
    %v158 = vpack.c.b16 %v143, %v142
    %v159 = vpack.c.b16 %v145, %v144
    %v160 = vpack.c.b16 %v147, %v146
    %v161 = vpack.c.b16 %v149, %v148
    %v162 = vpack.c.b16 %v151, %v150
    %v163 = vpack.c.b16 %v153, %v152
    %v164 = vpack.c.b16 %v155, %v154
    %v165 = vpack.c.b16 %v157, %v156
    %174 = vmatprep.subr.bf16.mxu0 0
    %175 = vmatpush1.bf16.msra.mxu0 %v165
    %176 = vmatprep.subr.bf16.mxu0 0
    %177 = vmatpush1.bf16.msra.mxu0 %v164
    %178 = vmatprep.subr.bf16.mxu0 0
    %179 = vmatpush1.bf16.msra.mxu0 %v163
    %180 = vmatprep.subr.bf16.mxu0 0
    %181 = vmatpush1.bf16.msra.mxu0 %v162
    %182 = vmatprep.subr.bf16.mxu0 0
    %183 = vmatpush1.bf16.msra.mxu0 %v161
    %184 = vmatprep.subr.bf16.mxu0 0
    %185 = vmatpush1.bf16.msra.mxu0 %v160
    %186 = vmatprep.subr.bf16.mxu0 0
    %187 = vmatpush1.bf16.msra.mxu0 %v159
    %188 = vmatprep.subr.bf16.mxu0 0
    %189 = vmatpush1.bf16.msra.mxu0 %v158
    %190 = vmatprep.subr.bf16.mxu0 0
    %191 = vmatpush2.bf16.msra.mxu0 0
    %192 = vmatprep.subr.bf16.mxu0 0
    %193 = vmatpush2.bf16.msra.mxu0 0
    %194 = vmatprep.subr.bf16.mxu0 0
    %195 = vmatpush2.bf16.msra.mxu0 0
    %196 = vmatprep.subr.bf16.mxu0 0
    %197 = vmatpush2.bf16.msra.mxu0 0
    %198 = vmatprep.subr.bf16.mxu0 0
    %199 = vmatpush2.bf16.msra.mxu0 0
    %200 = vmatprep.subr.bf16.mxu0 0
    %201 = vmatpush2.bf16.msra.mxu0 0
    %202 = vmatprep.subr.bf16.mxu0 0
    %203 = vmatpush2.bf16.msra.mxu0 0
    %204 = vmatprep.subr.bf16.mxu0 0
    %205 = vmatpush2.bf16.msra.mxu0 0
    %206 = vmatprep.mubr.bf16.mxu0 0
    %207 = vmatmul.mubr.bf16.gmra.mxu0 %v102
    %v208 = vpop.f32.mrf.mxu0
    %v209 = vadd.f32 %v124, %v208
    %v210 = vpop.f32.mrf.mxu0
    %v211 = vpop.f32.mrf.mxu0
    %v212 = vpop.f32.mrf.mxu0
    %213 = vdwg.mxu0
    %v214 = vmax.f32 %v209, 0.0
    %v215 = vpack.c.bf16 %v214, %v214
    %v216 = vld [vmem:[%s3] sm:$0xf]
    %v217 = vld [vmem:[%s3 + $0x4] sm:$0xf]
    %v218 = vld [vmem:[%s3 + $0x8] sm:$0xf]
    %v219 = vld [vmem:[%s3 + $0xc] sm:$0xf]
    %v220 = vld [vmem:[%s3 + $0x10] sm:$0xf]
    %v221 = vld [vmem:[%s3 + $0x14] sm:$0xf]
    %v222 = vld [vmem:[%s3 + $0x18] sm:$0xf]
    %v223 = vld [vmem:[%s3 + $0x1c] sm:$0xf]
    %v224 = vld [vmem:[%s3 + $0x20] sm:$0xf]
    %v225 = vld [vmem:[%s3 + $0x24] sm:$0xf]
    %v226 = vld [vmem:[%s3 + $0x28] sm:$0xf]
    %v227 = vld [vmem:[%s3 + $0x2c] sm:$0xf]
    %v228 = vld [vmem:[%s3 + $0x30] sm:$0xf]
    %v229 = vld [vmem:[%s3 + $0x34] sm:$0xf]
    %v230 = vld [vmem:[%s3 + $0x38] sm:$0xf]
    %v231 = vld [vmem:[%s3 + $0x3c] sm:$0xf]
    %v232 = vld [vmem:[%s6] sm:$0x1]
    %v234 = vlaneseq
    %v235 = vshrl.u32 %v234, 7
    %v236 = vsub.s32 0, %v235
    %v237 = vrot.slane %v232, %v236
    %v255 = vunpack.c.l.b16 %v216
    %v256 = vunpack.c.l.b16 %v217
    %v257 = vunpack.c.l.b16 %v218
    %v258 = vunpack.c.l.b16 %v219
    %v259 = vunpack.c.l.b16 %v220
    %v260 = vunpack.c.l.b16 %v221
    %v261 = vunpack.c.l.b16 %v222
    %v262 = vunpack.c.l.b16 %v223
    %v263 = vunpack.c.l.b16 %v224
    %v264 = vunpack.c.l.b16 %v225
    %v265 = vunpack.c.l.b16 %v226
    %v266 = vunpack.c.l.b16 %v227
    %v267 = vunpack.c.l.b16 %v228
    %v268 = vunpack.c.l.b16 %v229
    %v269 = vunpack.c.l.b16 %v230
    %v270 = vunpack.c.l.b16 %v231
    %v271 = vpack.c.b16 %v256, %v255
    %v272 = vpack.c.b16 %v258, %v257
    %v273 = vpack.c.b16 %v260, %v259
    %v274 = vpack.c.b16 %v262, %v261
    %v275 = vpack.c.b16 %v264, %v263
    %v276 = vpack.c.b16 %v266, %v265
    %v277 = vpack.c.b16 %v268, %v267
    %v278 = vpack.c.b16 %v270, %v269
    %287 = vmatprep.subr.bf16.mxu0 0
    %288 = vmatpush1.bf16.msra.mxu0 %v278
    %289 = vmatprep.subr.bf16.mxu0 0
    %290 = vmatpush1.bf16.msra.mxu0 %v277
    %291 = vmatprep.subr.bf16.mxu0 0
    %292 = vmatpush1.bf16.msra.mxu0 %v276
    %293 = vmatprep.subr.bf16.mxu0 0
    %294 = vmatpush1.bf16.msra.mxu0 %v275
    %295 = vmatprep.subr.bf16.mxu0 0
    %296 = vmatpush1.bf16.msra.mxu0 %v274
    %297 = vmatprep.subr.bf16.mxu0 0
    %298 = vmatpush1.bf16.msra.mxu0 %v273
    %299 = vmatprep.subr.bf16.mxu0 0
    %300 = vmatpush1.bf16.msra.mxu0 %v272
    %301 = vmatprep.subr.bf16.mxu0 0
    %302 = vmatpush1.bf16.msra.mxu0 %v271
    %303 = vmatprep.subr.bf16.mxu0 0
    %304 = vmatpush2.bf16.msra.mxu0 0
    %305 = vmatprep.subr.bf16.mxu0 0
    %306 = vmatpush2.bf16.msra.mxu0 0
    %307 = vmatprep.subr.bf16.mxu0 0
    %308 = vmatpush2.bf16.msra.mxu0 0
    %309 = vmatprep.subr.bf16.mxu0 0
    %310 = vmatpush2.bf16.msra.mxu0 0
    %311 = vmatprep.subr.bf16.mxu0 0
    %312 = vmatpush2.bf16.msra.mxu0 0
    %313 = vmatprep.subr.bf16.mxu0 0
    %314 = vmatpush2.bf16.msra.mxu0 0
    %315 = vmatprep.subr.bf16.mxu0 0
    %316 = vmatpush2.bf16.msra.mxu0 0
    %317 = vmatprep.subr.bf16.mxu0 0
    %318 = vmatpush2.bf16.msra.mxu0 0
    %319 = vmatprep.mubr.bf16.mxu0 0
    %320 = vmatmul.mubr.bf16.gmra.mxu0 %v215
    %v321 = vpop.f32.mrf.mxu0
    %v322 = vadd.f32 %v237, %v321
    %v323 = vpop.f32.mrf.mxu0
    %v324 = vpop.f32.mrf.mxu0
    %v325 = vpop.f32.mrf.mxu0
    %326 = vdwg.mxu0
    %v327 = vlaneseq
    %v328 = vand.u32 %v327, 127
    %vm329 = vcmp.lt.s32.totalorder %v328, 4
    %v330 = vxor.u32 %v322, 2147483648
    %v331 = vmul.f32 %v330, 1.442695
    %v332 = vpow.pop %v331
    %v333 = vadd.f32 %v332, 1.0
    %v334 = vrcp.pop %v333
    %v335 = vmul.f32 1.0, %v334
    %v336 = vsel %vm329, %v335, %v322
    %vm337 = vcmask 64512
    %338 = vst.msk [vmem:[#allocation5] sm:$0xff] %vm337, %v336
    // Predicated region
    $region34: #{tpu_custom_call.1} parent=1 // pred_check
      _
    $region35: #{tpu_custom_call.1} parent=1 // pred_check_branch
      %340 = sbr.rel (0) target = $region37
    $region36: #{tpu_custom_call.1} parent=1 // pred_region
      %s342 = ssub.s32 128, 128
      %343 = vsyncadd [#allocation4], %s342
      %s345 = sshll.u32 [#allocation5], 4
      %s346 = int_to_ptr.vmem [resolvable:$true] %s345
      %348 = dma.vmem_to_hbm [thread:$0]  %s346, 128, %s7, [#allocation4]
    $region37: #{tpu_custom_call.1} parent=1 // pred_fallthru
      _
    // Predicated region
    $region38: #{tpu_custom_call.1} parent=1 // pred_check
      _
    $region39: #{tpu_custom_call.1} parent=1 // pred_check_branch
      %350 = sbr.rel (0) target = $region41
    $region40: #{tpu_custom_call.1} parent=1 // pred_region
      %351 = dma.done [#allocation4], 128
    $region41: #{tpu_custom_call.1} parent=1 // pred_fallthru
      _
    %352 = vsyncpa [#allocation3], 1
    %353 = vsyncpa [#allocation4], 1

</llo_original>
